<compile_context>
chip_gen: v5e
topology: v5e:2x2
jax: 0.10.0
libtpu: 0.0.40
codegen_flags: <defaults>
</compile_context>

<pallas_src>
import functools

import jax
import jax.numpy as jnp
from jax.experimental import pallas as pl
from jax.experimental.pallas import tpu as pltpu

EMBED = 128


def _round_up(n, m):
    return ((n + m - 1) // m) * m


def _resdyn_mlp_kernel(x_ref, w1_ref, b1_ref, w2_ref, b2_ref, w3_ref, b3_ref,
                       offsc_ref, scale_ref, o_ref):
    # Operand dtype for the MXU (f32 by default, bf16 when requested).
    cd = w1_ref.dtype

    x = x_ref[...]                                                     # (tb, d_in)
    h1 = jnp.dot(x, w1_ref[...], preferred_element_type=jnp.float32)  # (tb, 128) f32
    h1 = jnp.maximum(h1 + b1_ref[...], 0.0)                           # ReLU (f32)

    h2 = jnp.dot(h1.astype(cd), w2_ref[...],
                 preferred_element_type=jnp.float32)
    h2 = jnp.maximum(h2 + b2_ref[...], 0.0)                           # ReLU (f32)

    raw = jnp.dot(h2.astype(cd), w3_ref[...],
                  preferred_element_type=jnp.float32)                 # (tb, d_out)
    raw = jnp.tanh(raw + b3_ref[...])                                 # tanh (f32, EUP)

    # (raw + offset) * scale, with offset*scale pre-folded in the wrapper.
    o_ref[...] = (raw * scale_ref[...] + offsc_ref[...]).astype(o_ref.dtype)


@functools.partial(jax.jit, static_argnames=("tile_b", "mxu_dtype"))
def resdyn_mlp_forward(x, w1, b1, w2, b2, w3, b3, offset, scale, *,
                       tile_b=None, mxu_dtype=jnp.float32):
    B, d_in = x.shape
    d_out = w3.shape[1]

    # Fold the epilogue: (raw + offset) * scale == raw*scale + offset*scale.
    off_sc = (offset * scale).astype(jnp.float32)
    scale_f = scale.astype(jnp.float32)

    # Optional bf16 MXU operands (v6e/v7x). Biases / epilogue stay f32.
    if mxu_dtype != jnp.float32:
        x = x.astype(mxu_dtype)
        w1 = w1.astype(mxu_dtype)
        w2 = w2.astype(mxu_dtype)
        w3 = w3.astype(mxu_dtype)

    # Batch tiling: single tile for small B (overhead-bound); ~256-row tiles
    # with a multi-step pipelined grid for large B.
    if tile_b is None:
        tile_b = _round_up(B, 8) if B <= 512 else 256
    tile_b = max(8, _round_up(int(tile_b), 8))
    B_p = _round_up(B, tile_b)
    if B_p != B:
        x = jnp.pad(x, ((0, B_p - B), (0, 0)))   # ragged batch -> zero rows

    grid = (B_p // tile_b,)
    const = lambda i: (0, 0)   # weights/biases/offset/scale: same block every step

    out_p = pl.pallas_call(
        _resdyn_mlp_kernel,
        out_shape=jax.ShapeDtypeStruct((B_p, d_out), jnp.float32),
        grid=grid,
        in_specs=[
            pl.BlockSpec((tile_b, d_in), lambda i: (i, 0)),   # x tile (unpadded width)
            pl.BlockSpec((d_in, EMBED), const),               # W1
            pl.BlockSpec((1, EMBED), const),                  # b1 (2-D, sublane bcast)
            pl.BlockSpec((EMBED, EMBED), const),              # W2
            pl.BlockSpec((1, EMBED), const),                  # b2
            pl.BlockSpec((EMBED, d_out), const),              # W3 (unpadded width)
            pl.BlockSpec((1, d_out), const),                  # b3
            pl.BlockSpec((1, d_out), const),                  # offset*scale
            pl.BlockSpec((1, d_out), const),                  # scale
        ],
        out_specs=pl.BlockSpec((tile_b, d_out), lambda i: (i, 0)),
        compiler_params=pltpu.CompilerParams(
            dimension_semantics=("parallel",)),
    )(x, w1, b1, w2, b2, w3, b3, off_sc, scale_f)

    return out_p[:B] if B_p != B else out_p


def _orthogonal(key, out_dim, in_dim):
    """Deterministic orthogonal init (mimics torch.nn.init.orthogonal_, gain=1)."""
    rows, cols = out_dim, in_dim
    flat = jax.random.normal(key, (max(rows, cols), min(rows, cols)), jnp.float32)
    q, r = jnp.linalg.qr(flat)
    q = q * jnp.sign(jnp.diagonal(r))            # make decomposition unique
    if rows < cols:
        q = q.T
    return q[:rows, :cols]                       # [out, in] like torch Linear.weight


def make_params(key, input_dim, output_dim, res_dyn_param_dim=1):
    ks = jax.random.split(key, 6)
    # torch Linear weight is [out, in]; kernel wants [in, out] -> transpose.
    w1 = _orthogonal(ks[0], EMBED, input_dim).T
    w2 = _orthogonal(ks[1], EMBED, EMBED).T
    w3 = _orthogonal(ks[2], output_dim, EMBED).T
    unif = lambda k, n: jax.random.uniform(k, (1, n), jnp.float32, -0.2, 0.21)
    b1, b2, b3 = unif(ks[3], EMBED), unif(ks[4], EMBED), unif(ks[5], output_dim)

    tables = {
        0: ([0.0, 0.0, 0.0], [0.5, 0.5, 0.5]),
        1: ([0.1, 0.25, -0.1], [1.0, 2.0, 1.0]),
        2: ([0.0, 0.0, -0.2], [1.0, 1.0, 2.0]),
        3: ([0.0, 0.0, 0.2], [2.0, 2.0, 2.0]),
        4: ([0.0, 0.0, 0.0], [1.0, 1.0, 1.0]),
    }
    off, sc = tables[res_dyn_param_dim]
    offset = jnp.asarray([off], jnp.float32)     # (1, 3), kept 2-D on purpose
    scale = jnp.asarray([sc], jnp.float32)       # (1, 3)
    return w1, b1, w2, b2, w3, b3, offset, scale


def reference_forward(x, w1, b1, w2, b2, w3, b3, offset, scale):
    h1 = jnp.maximum(x @ w1 + b1, 0.0)
    h2 = jnp.maximum(h1 @ w2 + b2, 0.0)
    raw = jnp.tanh(h2 @ w3 + b3)
    return (raw + offset) * scale


if __name__ == "__main__":
    key = jax.random.PRNGKey(0)
    k_x, k_p = jax.random.split(key)

    batch, input_dim, output_dim = 200, 12, 3    # drone.py: offset/scale are 3-vectors
    x = jax.random.normal(k_x, (batch, input_dim), jnp.float32)
    params = make_params(k_p, input_dim, output_dim, res_dyn_param_dim=1)
    ref = reference_forward(x, *params)

    # Default path: single tile, f32 MXU operands (bit-level safe vs. reference).
    out = jax.block_until_ready(resdyn_mlp_forward(x, *params))
    assert out.shape == (batch, output_dim)
    assert jnp.allclose(out, ref, atol=1e-5, rtol=1e-5), "mismatch vs JAX reference"

    # Multi-step pipelined grid with a ragged (zero-padded) batch.
    out2 = jax.block_until_ready(resdyn_mlp_forward(x, *params, tile_b=64))
    assert jnp.allclose(out2, ref, atol=1e-5, rtol=1e-5), "mismatch (tiled path)"

    # bf16 MXU-operand path (recommended default on v6e/v7x); f32 accumulation
    # and f32 epilogue, so errors stay at the bf16-operand level.
    out3 = jax.block_until_ready(
        resdyn_mlp_forward(x, *params, mxu_dtype=jnp.bfloat16))
    assert jnp.allclose(out3, ref, atol=5e-2, rtol=5e-2), "mismatch (bf16 path)"

    print("KERNEL_OK")
</pallas_src>

<mosaic_0001>
module attributes {stable_mosaic.version = 11 : i64} {
  func.func @_resdyn_mlp_kernel(%arg0: i32, %arg1: memref<200x12xf32, #tpu.memory_space<vmem>>, %arg2: memref<12x128xf32, #tpu.memory_space<vmem>>, %arg3: memref<1x128xf32, #tpu.memory_space<vmem>>, %arg4: memref<128x128xf32, #tpu.memory_space<vmem>>, %arg5: memref<1x128xf32, #tpu.memory_space<vmem>>, %arg6: memref<128x3xf32, #tpu.memory_space<vmem>>, %arg7: memref<1x3xf32, #tpu.memory_space<vmem>>, %arg8: memref<1x3xf32, #tpu.memory_space<vmem>>, %arg9: memref<1x3xf32, #tpu.memory_space<vmem>>, %arg10: memref<200x3xf32, #tpu.memory_space<vmem>>) attributes {dimension_semantics = [#tpu.dimension_semantics<parallel>], iteration_bounds = array<i64: 1>, scalar_prefetch = 0 : i64, scratch_operands = 0 : i64, tpu.core_type = #tpu.core_type<tc>, window_params = [{transform_indices = @transform_0, window_bounds = array<i64: 200, 12>}, {pipeline_mode = #tpu.pipeline_mode<synchronous>, transform_indices = @transform_1, window_bounds = array<i64: 12, 128>}, {pipeline_mode = #tpu.pipeline_mode<synchronous>, transform_indices = @transform_2, window_bounds = array<i64: 1, 128>}, {pipeline_mode = #tpu.pipeline_mode<synchronous>, transform_indices = @transform_3, window_bounds = array<i64: 128, 128>}, {pipeline_mode = #tpu.pipeline_mode<synchronous>, transform_indices = @transform_4, window_bounds = array<i64: 1, 128>}, {pipeline_mode = #tpu.pipeline_mode<synchronous>, transform_indices = @transform_5, window_bounds = array<i64: 128, 3>}, {pipeline_mode = #tpu.pipeline_mode<synchronous>, transform_indices = @transform_6, window_bounds = array<i64: 1, 3>}, {pipeline_mode = #tpu.pipeline_mode<synchronous>, transform_indices = @transform_7, window_bounds = array<i64: 1, 3>}, {pipeline_mode = #tpu.pipeline_mode<synchronous>, transform_indices = @transform_8, window_bounds = array<i64: 1, 3>}, {transform_indices = @transform_9, window_bounds = array<i64: 200, 3>}]} {
    %c0 = arith.constant 0 : index
    %c0_0 = arith.constant 0 : index
    %0 = vector.load %arg1[%c0, %c0_0] : memref<200x12xf32, #tpu.memory_space<vmem>>, vector<200x12xf32>
    %c0_1 = arith.constant 0 : index
    %c0_2 = arith.constant 0 : index
    %1 = vector.load %arg2[%c0_1, %c0_2] : memref<12x128xf32, #tpu.memory_space<vmem>>, vector<12x128xf32>
    %cst = arith.constant dense<0.000000e+00> : vector<200x128xf32>
    %2 = tpu.matmul %0, %1, %cst {dimension_numbers = #tpu.dot_dimension_numbers<[1], [0], [0], [1], [0, 0, 1, 1], [], []>} : vector<200x12xf32>, vector<12x128xf32>, vector<200x128xf32> -> vector<200x128xf32>
    %c0_3 = arith.constant 0 : index
    %c0_4 = arith.constant 0 : index
    %3 = vector.load %arg3[%c0_3, %c0_4] : memref<1x128xf32, #tpu.memory_space<vmem>>, vector<1x128xf32>
    %4 = vector.broadcast %3 : vector<1x128xf32> to vector<200x128xf32>
    %5 = arith.addf %2, %4 : vector<200x128xf32>
    %cst_5 = arith.constant 0.000000e+00 : f32
    %6 = vector.broadcast %cst_5 : f32 to vector<200x128xf32>
    %7 = arith.maximumf %5, %6 : vector<200x128xf32>
    %c0_6 = arith.constant 0 : index
    %c0_7 = arith.constant 0 : index
    %8 = vector.load %arg4[%c0_6, %c0_7] : memref<128x128xf32, #tpu.memory_space<vmem>>, vector<128x128xf32>
    %cst_8 = arith.constant dense<0.000000e+00> : vector<200x128xf32>
    %9 = tpu.matmul %7, %8, %cst_8 {dimension_numbers = #tpu.dot_dimension_numbers<[1], [0], [0], [1], [0, 0, 1, 1], [], []>} : vector<200x128xf32>, vector<128x128xf32>, vector<200x128xf32> -> vector<200x128xf32>
    %c0_9 = arith.constant 0 : index
    %c0_10 = arith.constant 0 : index
    %10 = vector.load %arg5[%c0_9, %c0_10] : memref<1x128xf32, #tpu.memory_space<vmem>>, vector<1x128xf32>
    %11 = vector.broadcast %10 : vector<1x128xf32> to vector<200x128xf32>
    %12 = arith.addf %9, %11 : vector<200x128xf32>
    %cst_11 = arith.constant 0.000000e+00 : f32
    %13 = vector.broadcast %cst_11 : f32 to vector<200x128xf32>
    %14 = arith.maximumf %12, %13 : vector<200x128xf32>
    %c0_12 = arith.constant 0 : index
    %c0_13 = arith.constant 0 : index
    %15 = vector.load %arg6[%c0_12, %c0_13] : memref<128x3xf32, #tpu.memory_space<vmem>>, vector<128x3xf32>
    %cst_14 = arith.constant dense<0.000000e+00> : vector<200x3xf32>
    %16 = tpu.matmul %14, %15, %cst_14 {dimension_numbers = #tpu.dot_dimension_numbers<[1], [0], [0], [1], [0, 0, 1, 1], [], []>} : vector<200x128xf32>, vector<128x3xf32>, vector<200x3xf32> -> vector<200x3xf32>
    %c0_15 = arith.constant 0 : index
    %c0_16 = arith.constant 0 : index
    %17 = vector.load %arg7[%c0_15, %c0_16] : memref<1x3xf32, #tpu.memory_space<vmem>>, vector<1x3xf32>
    %18 = vector.broadcast %17 : vector<1x3xf32> to vector<200x3xf32>
    %19 = arith.addf %16, %18 : vector<200x3xf32>
    %20 = math.tanh %19 : vector<200x3xf32>
    %c0_17 = arith.constant 0 : index
    %c0_18 = arith.constant 0 : index
    %21 = vector.load %arg9[%c0_17, %c0_18] : memref<1x3xf32, #tpu.memory_space<vmem>>, vector<1x3xf32>
    %22 = vector.broadcast %21 : vector<1x3xf32> to vector<200x3xf32>
    %23 = arith.mulf %20, %22 : vector<200x3xf32>
    %c0_19 = arith.constant 0 : index
    %c0_20 = arith.constant 0 : index
    %24 = vector.load %arg8[%c0_19, %c0_20] : memref<1x3xf32, #tpu.memory_space<vmem>>, vector<1x3xf32>
    %25 = vector.broadcast %24 : vector<1x3xf32> to vector<200x3xf32>
    %26 = arith.addf %23, %25 : vector<200x3xf32>
    %c0_21 = arith.constant 0 : index
    %c0_22 = arith.constant 0 : index
    %27 = vector.load %arg10[%c0_21, %c0_22] : memref<200x3xf32, #tpu.memory_space<vmem>>, vector<200x3xf32>
    tpu.vector_store %arg10[%c0_21, %c0_22], %26 {strides = array<i32>} : memref<200x3xf32, #tpu.memory_space<vmem>>, vector<200x3xf32>,
    return
  }
  func.func @transform_0(%arg0: i32) -> (i32, i32) {
    %c0_i32 = arith.constant 0 : i32
    %c0_i32_0 = arith.constant 0 : i32
    return %arg0, %c0_i32 : i32, i32
  }
  func.func @transform_1(%arg0: i32) -> (i32, i32) {
    %c0_i32 = arith.constant 0 : i32
    %c0_i32_0 = arith.constant 0 : i32
    %c0_i32_1 = arith.constant 0 : i32
    return %c0_i32, %c0_i32_0 : i32, i32
  }
  func.func @transform_2(%arg0: i32) -> (i32, i32) {
    %c0_i32 = arith.constant 0 : i32
    %c0_i32_0 = arith.constant 0 : i32
    %c0_i32_1 = arith.constant 0 : i32
    return %c0_i32, %c0_i32_0 : i32, i32
  }
  func.func @transform_3(%arg0: i32) -> (i32, i32) {
    %c0_i32 = arith.constant 0 : i32
    %c0_i32_0 = arith.constant 0 : i32
    %c0_i32_1 = arith.constant 0 : i32
    return %c0_i32, %c0_i32_0 : i32, i32
  }
  func.func @transform_4(%arg0: i32) -> (i32, i32) {
    %c0_i32 = arith.constant 0 : i32
    %c0_i32_0 = arith.constant 0 : i32
    %c0_i32_1 = arith.constant 0 : i32
    return %c0_i32, %c0_i32_0 : i32, i32
  }
  func.func @transform_5(%arg0: i32) -> (i32, i32) {
    %c0_i32 = arith.constant 0 : i32
    %c0_i32_0 = arith.constant 0 : i32
    %c0_i32_1 = arith.constant 0 : i32
    return %c0_i32, %c0_i32_0 : i32, i32
  }
  func.func @transform_6(%arg0: i32) -> (i32, i32) {
    %c0_i32 = arith.constant 0 : i32
    %c0_i32_0 = arith.constant 0 : i32
    %c0_i32_1 = arith.constant 0 : i32
    return %c0_i32, %c0_i32_0 : i32, i32
  }
  func.func @transform_7(%arg0: i32) -> (i32, i32) {
    %c0_i32 = arith.constant 0 : i32
    %c0_i32_0 = arith.constant 0 : i32
    %c0_i32_1 = arith.constant 0 : i32
    return %c0_i32, %c0_i32_0 : i32, i32
  }
  func.func @transform_8(%arg0: i32) -> (i32, i32) {
    %c0_i32 = arith.constant 0 : i32
    %c0_i32_0 = arith.constant 0 : i32
    %c0_i32_1 = arith.constant 0 : i32
    return %c0_i32, %c0_i32_0 : i32, i32
  }
  func.func @transform_9(%arg0: i32) -> (i32, i32) {
    %c0_i32 = arith.constant 0 : i32
    %c0_i32_0 = arith.constant 0 : i32
    return %arg0, %c0_i32 : i32, i32
  }
}

</mosaic_0001>

<llo_original>
// kernel: mul.1
$region0: #{mul.1}
  #allocation0 [shape = 's32[1]{0}', space=sflag, size = 0x4, scoped, tag = 'scoped memory for mul.1']
  %s0 = inlined_call_operand.vmem [shape: f32[1,3], index: 0, kind: input, shape index: {}]
  %s1 = inlined_call_operand.vmem [shape: f32[1,3], index: 1, kind: input, shape index: {}]
  %s2 = inlined_call_operand.vmem [shape: f32[1,3], index: 2, kind: output, shape index: {}]
  %v3 = vld [vmem:[%s0] sm:$0x1]
  %v4 = vld [vmem:[%s1] sm:$0x1]
  %5 = xla_tuple %v3, %v4
  %6 = xla_tuple %5
  %v7 = vmul.f32 %v3, %v4
  %8 = xla_tuple %v7
  %9 = vst [vmem:[%s2] sm:$0x1] %v7

// kernel: resdyn_mlp_forward.1
$region0: #{resdyn_mlp_forward.1}
  #allocation0 [shape = 'u32[]', space=smem, size = 0x4, offset = 0x4, fixed_abs, tag = 'smem constant byte address 0x4 - core index']
  #allocation1 [shape = 'u32[72,128]{1,0:T(1,128)}', space=vmem, size = 0x9000, scoped, tag = 'internal scratch']
  %s0 = inlined_call_operand.vmem [shape: f32[200,12], index: 0, kind: input, shape index: {}]
  %s1 = inlined_call_operand.vmem [shape: f32[12,128], index: 1, kind: input, shape index: {}]
  %s2 = inlined_call_operand.vmem [shape: f32[1,128], index: 2, kind: input, shape index: {}]
  %s3 = inlined_call_operand.vmem [shape: f32[128,128], index: 3, kind: input, shape index: {}]
  %s4 = inlined_call_operand.vmem [shape: f32[1,128], index: 4, kind: input, shape index: {}]
  %s5 = inlined_call_operand.vmem [shape: f32[128,3], index: 5, kind: input, shape index: {}]
  %s6 = inlined_call_operand.vmem [shape: f32[1,3], index: 6, kind: input, shape index: {}]
  %s7 = inlined_call_operand.vmem [shape: f32[1,3], index: 7, kind: input, shape index: {}]
  %s8 = inlined_call_operand.vmem [shape: f32[1,3], index: 8, kind: input, shape index: {}]
  %s9 = inlined_call_operand.vmem [shape: f32[200,3], index: 9, kind: output, shape index: {}]
  %s10 = sld [smem:[#allocation0]]
  $region46: #{resdyn_mlp_forward.1} parent=0
    _
  %s12 = ssub.s32 1, %s10
  %s13 = scalar_select 0, %s12, %s10
  // Predicated region
  $region2: #{resdyn_mlp_forward.1} parent=0 // pred_check
    _
  $region3: #{resdyn_mlp_forward.1} parent=0 // pred_check_branch
    %15 = sbr.rel (0) target = $region5
  $region4: #{resdyn_mlp_forward.1} parent=0 // pred_region
    _
  $region5: #{resdyn_mlp_forward.1} parent=0 // pred_fallthru
    _
  // Predicated region
  $region6: #{resdyn_mlp_forward.1} parent=0 // pred_check
    _
  $region7: #{resdyn_mlp_forward.1} parent=0 // pred_check_branch
    %17 = sbr.rel (0) target = $region9
  $region8: #{resdyn_mlp_forward.1} parent=0 // pred_region
    _
  $region9: #{resdyn_mlp_forward.1} parent=0 // pred_fallthru
    _
  // Predicated region
  $region10: #{resdyn_mlp_forward.1} parent=0 // pred_check
    _
  $region11: #{resdyn_mlp_forward.1} parent=0 // pred_check_branch
    %19 = sbr.rel (0) target = $region13
  $region12: #{resdyn_mlp_forward.1} parent=0 // pred_region
    _
  $region13: #{resdyn_mlp_forward.1} parent=0 // pred_fallthru
    _
  // Predicated region
  $region14: #{resdyn_mlp_forward.1} parent=0 // pred_check
    _
  $region15: #{resdyn_mlp_forward.1} parent=0 // pred_check_branch
    %21 = sbr.rel (0) target = $region17
  $region16: #{resdyn_mlp_forward.1} parent=0 // pred_region
    _
  $region17: #{resdyn_mlp_forward.1} parent=0 // pred_fallthru
    _
  // Predicated region
  $region18: #{resdyn_mlp_forward.1} parent=0 // pred_check
    _
  $region19: #{resdyn_mlp_forward.1} parent=0 // pred_check_branch
    %23 = sbr.rel (0) target = $region21
  $region20: #{resdyn_mlp_forward.1} parent=0 // pred_region
    _
  $region21: #{resdyn_mlp_forward.1} parent=0 // pred_fallthru
    _
  // Predicated region
  $region22: #{resdyn_mlp_forward.1} parent=0 // pred_check
    _
  $region23: #{resdyn_mlp_forward.1} parent=0 // pred_check_branch
    %25 = sbr.rel (0) target = $region25
  $region24: #{resdyn_mlp_forward.1} parent=0 // pred_region
    _
  $region25: #{resdyn_mlp_forward.1} parent=0 // pred_fallthru
    _
  // Predicated region
  $region26: #{resdyn_mlp_forward.1} parent=0 // pred_check
    _
  $region27: #{resdyn_mlp_forward.1} parent=0 // pred_check_branch
    %27 = sbr.rel (0) target = $region29
  $region28: #{resdyn_mlp_forward.1} parent=0 // pred_region
    _
  $region29: #{resdyn_mlp_forward.1} parent=0 // pred_fallthru
    _
  // Predicated region
  $region30: #{resdyn_mlp_forward.1} parent=0 // pred_check
    _
  $region31: #{resdyn_mlp_forward.1} parent=0 // pred_check_branch
    %29 = sbr.rel (0) target = $region33
  $region32: #{resdyn_mlp_forward.1} parent=0 // pred_region
    _
  $region33: #{resdyn_mlp_forward.1} parent=0 // pred_fallthru
    _
  // Predicated region
  $region34: #{resdyn_mlp_forward.1} parent=0 // pred_check
    _
  $region35: #{resdyn_mlp_forward.1} parent=0 // pred_check_branch
    %31 = sbr.rel (0) target = $region37
  $region36: #{resdyn_mlp_forward.1} parent=0 // pred_region
    _
  $region37: #{resdyn_mlp_forward.1} parent=0 // pred_fallthru
    _
  %v32 = vld [vmem:[%s0] sm:$0xff]
  %v33 = vld [vmem:[%s0 + $0x8] sm:$0xff]
  %v34 = vld [vmem:[%s0 + $0x10] sm:$0xff]
  %v35 = vld [vmem:[%s0 + $0x18] sm:$0xff]
  %v36 = vld [vmem:[%s0 + $0x20] sm:$0xff]
  %v37 = vld [vmem:[%s0 + $0x28] sm:$0xff]
  %v38 = vld [vmem:[%s0 + $0x30] sm:$0xff]
  %v39 = vld [vmem:[%s0 + $0x38] sm:$0xff]
  %v40 = vld [vmem:[%s0 + $0x40] sm:$0xff]
  %v41 = vld [vmem:[%s0 + $0x48] sm:$0xff]
  %v42 = vld [vmem:[%s0 + $0x50] sm:$0xff]
  %v43 = vld [vmem:[%s0 + $0x58] sm:$0xff]
  %v44 = vld [vmem:[%s0 + $0x60] sm:$0xff]
  %v45 = vld [vmem:[%s0 + $0x68] sm:$0xff]
  %v46 = vld [vmem:[%s0 + $0x70] sm:$0xff]
  %v47 = vld [vmem:[%s0 + $0x78] sm:$0xff]
  %v48 = vld [vmem:[%s0 + $0x80] sm:$0xff]
  %v49 = vld [vmem:[%s0 + $0x88] sm:$0xff]
  %v50 = vld [vmem:[%s0 + $0x90] sm:$0xff]
  %v51 = vld [vmem:[%s0 + $0x98] sm:$0xff]
  %v52 = vld [vmem:[%s0 + $0xa0] sm:$0xff]
  %v53 = vld [vmem:[%s0 + $0xa8] sm:$0xff]
  %v54 = vld [vmem:[%s0 + $0xb0] sm:$0xff]
  %v55 = vld [vmem:[%s0 + $0xb8] sm:$0xff]
  %v56 = vld [vmem:[%s0 + $0xc0] sm:$0xff]
  %v57 = vld [vmem:[%s1] sm:$0xff]
  %v58 = vld [vmem:[%s1 + $0x8] sm:$0xf]
  %v59 = vld [vmem:[%s2] sm:$0x1]
  %v61 = vperm.slane %v59, 0
  %vm63 = vcmask 97280
  %v65 = vsel %vm63, %v32, 0
  %v68 = vsel %vm63, %v33, 0
  %v71 = vsel %vm63, %v34, 0
  %v74 = vsel %vm63, %v35, 0
  %v77 = vsel %vm63, %v36, 0
  %v80 = vsel %vm63, %v37, 0
  %v83 = vsel %vm63, %v38, 0
  %v86 = vsel %vm63, %v39, 0
  %v89 = vsel %vm63, %v40, 0
  %v92 = vsel %vm63, %v41, 0
  %v95 = vsel %vm63, %v42, 0
  %v98 = vsel %vm63, %v43, 0
  %v101 = vsel %vm63, %v44, 0
  %v104 = vsel %vm63, %v45, 0
  %v107 = vsel %vm63, %v46, 0
  %v110 = vsel %vm63, %v47, 0
  %v113 = vsel %vm63, %v48, 0
  %v116 = vsel %vm63, %v49, 0
  %v119 = vsel %vm63, %v50, 0
  %v122 = vsel %vm63, %v51, 0
  %v125 = vsel %vm63, %v52, 0
  %v128 = vsel %vm63, %v53, 0
  %v131 = vsel %vm63, %v54, 0
  %v134 = vsel %vm63, %v55, 0
  %v137 = vsel %vm63, %v56, 0
  %vm139 = vcmask 1043456
  %v141 = vsel %vm139, %v58, 0
  %143 = vmatpush.msra.mxu0 0.0
  %144 = vmatpush.msra.mxu0 0.0
  %145 = vmatpush.msra.mxu0 0.0
  %146 = vmatpush.msra.mxu0 0.0
  %147 = vmatpush.msra.mxu0 0.0
  %148 = vmatpush.msra.mxu0 0.0
  %149 = vmatpush.msra.mxu0 0.0
  %150 = vmatpush.msra.mxu0 0.0
  %151 = vmatpush.msra.mxu0 0.0
  %152 = vmatpush.msra.mxu0 0.0
  %153 = vmatpush.msra.mxu0 0.0
  %154 = vmatpush.msra.mxu0 0.0
  %155 = vmatpush.msra.mxu0 0.0
  %156 = vmatpush.msra.mxu0 0.0
  %157 = vmatpush.msra.mxu0 %v141
  %158 = vmatpush.msra.mxu0 %v57
  %159 = vmatmul.f32.gmra.mxu0 %v65
  %v160 = vpop.f32.mrf.mxu0
  %v161 = vadd.f32 %v61, %v160
  %162 = vmatmul.f32.gmra.mxu0 %v68
  %v163 = vpop.f32.mrf.mxu0
  %v164 = vadd.f32 %v61, %v163
  %165 = vmatmul.f32.gmra.mxu0 %v71
  %v166 = vpop.f32.mrf.mxu0
  %v167 = vadd.f32 %v61, %v166
  %168 = vmatmul.f32.gmra.mxu0 %v74
  %v169 = vpop.f32.mrf.mxu0
  %v170 = vadd.f32 %v61, %v169
  %171 = vmatmul.f32.gmra.mxu0 %v77
  %v172 = vpop.f32.mrf.mxu0
  %v173 = vadd.f32 %v61, %v172
  %174 = vmatmul.f32.gmra.mxu0 %v80
  %v175 = vpop.f32.mrf.mxu0
  %v176 = vadd.f32 %v61, %v175
  %177 = vmatmul.f32.gmra.mxu0 %v83
  %v178 = vpop.f32.mrf.mxu0
  %v179 = vadd.f32 %v61, %v178
  %180 = vmatmul.f32.gmra.mxu0 %v86
  %v181 = vpop.f32.mrf.mxu0
  %v182 = vadd.f32 %v61, %v181
  %183 = vmatmul.f32.gmra.mxu0 %v89
  %v184 = vpop.f32.mrf.mxu0
  %v185 = vadd.f32 %v61, %v184
  %186 = vmatmul.f32.gmra.mxu0 %v92
  %v187 = vpop.f32.mrf.mxu0
  %v188 = vadd.f32 %v61, %v187
  %189 = vmatmul.f32.gmra.mxu0 %v95
  %v190 = vpop.f32.mrf.mxu0
  %v191 = vadd.f32 %v61, %v190
  %192 = vmatmul.f32.gmra.mxu0 %v98
  %v193 = vpop.f32.mrf.mxu0
  %v194 = vadd.f32 %v61, %v193
  %195 = vmatmul.f32.gmra.mxu0 %v101
  %v196 = vpop.f32.mrf.mxu0
  %v197 = vadd.f32 %v61, %v196
  %198 = vmatmul.f32.gmra.mxu0 %v104
  %v199 = vpop.f32.mrf.mxu0
  %v200 = vadd.f32 %v61, %v199
  %201 = vmatmul.f32.gmra.mxu0 %v107
  %v202 = vpop.f32.mrf.mxu0
  %v203 = vadd.f32 %v61, %v202
  %204 = vmatmul.f32.gmra.mxu0 %v110
  %v205 = vpop.f32.mrf.mxu0
  %v206 = vadd.f32 %v61, %v205
  %207 = vmatmul.f32.gmra.mxu0 %v113
  %v208 = vpop.f32.mrf.mxu0
  %v209 = vadd.f32 %v61, %v208
  %210 = vmatmul.f32.gmra.mxu0 %v116
  %v211 = vpop.f32.mrf.mxu0
  %v212 = vadd.f32 %v61, %v211
  %213 = vmatmul.f32.gmra.mxu0 %v119
  %v214 = vpop.f32.mrf.mxu0
  %v215 = vadd.f32 %v61, %v214
  %216 = vmatmul.f32.gmra.mxu0 %v122
  %v217 = vpop.f32.mrf.mxu0
  %v218 = vadd.f32 %v61, %v217
  %219 = vmatmul.f32.gmra.mxu0 %v125
  %v220 = vpop.f32.mrf.mxu0
  %v221 = vadd.f32 %v61, %v220
  %222 = vmatmul.f32.gmra.mxu0 %v128
  %v223 = vpop.f32.mrf.mxu0
  %v224 = vadd.f32 %v61, %v223
  %225 = vmatmul.f32.gmra.mxu0 %v131
  %v226 = vpop.f32.mrf.mxu0
  %v227 = vadd.f32 %v61, %v226
  %228 = vmatmul.f32.gmra.mxu0 %v134
  %v229 = vpop.f32.mrf.mxu0
  %v230 = vadd.f32 %v61, %v229
  %231 = vmatmul.f32.gmra.mxu0 %v137
  %v232 = vpop.f32.mrf.mxu0
  %v233 = vadd.f32 %v61, %v232
  %234 = vdwg.mxu0
  %v235 = vmax.f32 %v161, 0.0
  %v236 = vmax.f32 %v164, 0.0
  %v237 = vmax.f32 %v167, 0.0
  %v238 = vmax.f32 %v170, 0.0
  %v239 = vmax.f32 %v173, 0.0
  %v240 = vmax.f32 %v176, 0.0
  %v241 = vmax.f32 %v179, 0.0
  %v242 = vmax.f32 %v182, 0.0
  %v243 = vmax.f32 %v185, 0.0
  %v244 = vmax.f32 %v188, 0.0
  %v245 = vmax.f32 %v191, 0.0
  %v246 = vmax.f32 %v194, 0.0
  %v247 = vmax.f32 %v197, 0.0
  %v248 = vmax.f32 %v200, 0.0
  %v249 = vmax.f32 %v203, 0.0
  %v250 = vmax.f32 %v206, 0.0
  %v251 = vmax.f32 %v209, 0.0
  %v252 = vmax.f32 %v212, 0.0
  %v253 = vmax.f32 %v215, 0.0
  %v254 = vmax.f32 %v218, 0.0
  %v255 = vmax.f32 %v221, 0.0
  %v256 = vmax.f32 %v224, 0.0
  %v257 = vmax.f32 %v227, 0.0
  %v258 = vmax.f32 %v230, 0.0
  %v259 = vmax.f32 %v233, 0.0
  %v260 = vld [vmem:[%s3] sm:$0xff]
  %v261 = vld [vmem:[%s3 + $0x8] sm:$0xff]
  %v262 = vld [vmem:[%s3 + $0x10] sm:$0xff]
  %v263 = vld [vmem:[%s3 + $0x18] sm:$0xff]
  %v264 = vld [vmem:[%s3 + $0x20] sm:$0xff]
  %v265 = vld [vmem:[%s3 + $0x28] sm:$0xff]
  %v266 = vld [vmem:[%s3 + $0x30] sm:$0xff]
  %v267 = vld [vmem:[%s3 + $0x38] sm:$0xff]
  %v268 = vld [vmem:[%s3 + $0x40] sm:$0xff]
  %v269 = vld [vmem:[%s3 + $0x48] sm:$0xff]
  %v270 = vld [vmem:[%s3 + $0x50] sm:$0xff]
  %v271 = vld [vmem:[%s3 + $0x58] sm:$0xff]
  %v272 = vld [vmem:[%s3 + $0x60] sm:$0xff]
  %v273 = vld [vmem:[%s3 + $0x68] sm:$0xff]
  %v274 = vld [vmem:[%s3 + $0x70] sm:$0xff]
  %v275 = vld [vmem:[%s3 + $0x78] sm:$0xff]
  %v276 = vld [vmem:[%s4] sm:$0x1]
  %v278 = vperm.slane %v276, 0
  %280 = vmatpush.msra.mxu0 %v275
  %281 = vmatpush.msra.mxu0 %v274
  %282 = vmatpush.msra.mxu0 %v273
  %283 = vmatpush.msra.mxu0 %v272
  %284 = vmatpush.msra.mxu0 %v271
  %285 = vmatpush.msra.mxu0 %v270
  %286 = vmatpush.msra.mxu0 %v269
  %287 = vmatpush.msra.mxu0 %v268
  %288 = vmatpush.msra.mxu0 %v267
  %289 = vmatpush.msra.mxu0 %v266
  %290 = vmatpush.msra.mxu0 %v265
  %291 = vmatpush.msra.mxu0 %v264
  %292 = vmatpush.msra.mxu0 %v263
  %293 = vmatpush.msra.mxu0 %v262
  %294 = vmatpush.msra.mxu0 %v261
  %295 = vmatpush.msra.mxu0 %v260
  %296 = vmatmul.f32.gmra.mxu0 %v235
  %v297 = vpop.f32.mrf.mxu0
  %v298 = vadd.f32 %v278, %v297
  %299 = vmatmul.f32.gmra.mxu0 %v236
  %v300 = vpop.f32.mrf.mxu0
  %v301 = vadd.f32 %v278, %v300
  %302 = vmatmul.f32.gmra.mxu0 %v237
  %v303 = vpop.f32.mrf.mxu0
  %v304 = vadd.f32 %v278, %v303
  %305 = vmatmul.f32.gmra.mxu0 %v238
  %v306 = vpop.f32.mrf.mxu0
  %v307 = vadd.f32 %v278, %v306
  %308 = vmatmul.f32.gmra.mxu0 %v239
  %v309 = vpop.f32.mrf.mxu0
  %v310 = vadd.f32 %v278, %v309
  %311 = vmatmul.f32.gmra.mxu0 %v240
  %v312 = vpop.f32.mrf.mxu0
  %v313 = vadd.f32 %v278, %v312
  %314 = vmatmul.f32.gmra.mxu0 %v241
  %v315 = vpop.f32.mrf.mxu0
  %v316 = vadd.f32 %v278, %v315
  %317 = vmatmul.f32.gmra.mxu0 %v242
  %v318 = vpop.f32.mrf.mxu0
  %v319 = vadd.f32 %v278, %v318
  %320 = vmatmul.f32.gmra.mxu0 %v243
  %v321 = vpop.f32.mrf.mxu0
  %v322 = vadd.f32 %v278, %v321
  %323 = vmatmul.f32.gmra.mxu0 %v244
  %v324 = vpop.f32.mrf.mxu0
  %v325 = vadd.f32 %v278, %v324
  %326 = vmatmul.f32.gmra.mxu0 %v245
  %v327 = vpop.f32.mrf.mxu0
  %v328 = vadd.f32 %v278, %v327
  %329 = vmatmul.f32.gmra.mxu0 %v246
  %v330 = vpop.f32.mrf.mxu0
  %v331 = vadd.f32 %v278, %v330
  %332 = vmatmul.f32.gmra.mxu0 %v247
  %v333 = vpop.f32.mrf.mxu0
  %v334 = vadd.f32 %v278, %v333
  %335 = vmatmul.f32.gmra.mxu0 %v248
  %v336 = vpop.f32.mrf.mxu0
  %v337 = vadd.f32 %v278, %v336
  %338 = vmatmul.f32.gmra.mxu0 %v249
  %v339 = vpop.f32.mrf.mxu0
  %v340 = vadd.f32 %v278, %v339
  %341 = vmatmul.f32.gmra.mxu0 %v250
  %v342 = vpop.f32.mrf.mxu0
  %v343 = vadd.f32 %v278, %v342
  %344 = vmatmul.f32.gmra.mxu0 %v251
  %v345 = vpop.f32.mrf.mxu0
  %v346 = vadd.f32 %v278, %v345
  %347 = vmatmul.f32.gmra.mxu0 %v252
  %v348 = vpop.f32.mrf.mxu0
  %v349 = vadd.f32 %v278, %v348
  %350 = vmatmul.f32.gmra.mxu0 %v253
  %v351 = vpop.f32.mrf.mxu0
  %v352 = vadd.f32 %v278, %v351
  %353 = vmatmul.f32.gmra.mxu0 %v254
  %v354 = vpop.f32.mrf.mxu0
  %v355 = vadd.f32 %v278, %v354
  %356 = vmatmul.f32.gmra.mxu0 %v255
  %v357 = vpop.f32.mrf.mxu0
  %v358 = vadd.f32 %v278, %v357
  %359 = vmatmul.f32.gmra.mxu0 %v256
  %v360 = vpop.f32.mrf.mxu0
  %v361 = vadd.f32 %v278, %v360
  %362 = vmatmul.f32.gmra.mxu0 %v257
  %v363 = vpop.f32.mrf.mxu0
  %v364 = vadd.f32 %v278, %v363
  %365 = vmatmul.f32.gmra.mxu0 %v258
  %v366 = vpop.f32.mrf.mxu0
  %v367 = vadd.f32 %v278, %v366
  %368 = vmatmul.f32.gmra.mxu0 %v259
  %v369 = vpop.f32.mrf.mxu0
  %v370 = vadd.f32 %v278, %v369
  %371 = vdwg.mxu0
  %v372 = vmax.f32 %v298, 0.0
  %v373 = vmax.f32 %v301, 0.0
  %v374 = vmax.f32 %v304, 0.0
  %v375 = vmax.f32 %v307, 0.0
  %v376 = vmax.f32 %v310, 0.0
  %v377 = vmax.f32 %v313, 0.0
  %v378 = vmax.f32 %v316, 0.0
  %v379 = vmax.f32 %v319, 0.0
  %v380 = vmax.f32 %v322, 0.0
  %v381 = vmax.f32 %v325, 0.0
  %v382 = vmax.f32 %v328, 0.0
  %v383 = vmax.f32 %v331, 0.0
  %v384 = vmax.f32 %v334, 0.0
  %v385 = vmax.f32 %v337, 0.0
  %v386 = vmax.f32 %v340, 0.0
  %v387 = vmax.f32 %v343, 0.0
  %v388 = vmax.f32 %v346, 0.0
  %v389 = vmax.f32 %v349, 0.0
  %v390 = vmax.f32 %v352, 0.0
  %v391 = vmax.f32 %v355, 0.0
  %v392 = vmax.f32 %v358, 0.0
  %v393 = vmax.f32 %v361, 0.0
  %v394 = vmax.f32 %v364, 0.0
  %v395 = vmax.f32 %v367, 0.0
  %v396 = vmax.f32 %v370, 0.0
  %v397 = vld [vmem:[%s5] sm:$0xff]
  %v398 = vld [vmem:[%s5 + $0x8] sm:$0xff]
  %v399 = vld [vmem:[%s5 + $0x10] sm:$0xff]
  %v400 = vld [vmem:[%s5 + $0x18] sm:$0xff]
  %v401 = vld [vmem:[%s5 + $0x20] sm:$0xff]
  %v402 = vld [vmem:[%s5 + $0x28] sm:$0xff]
  %v403 = vld [vmem:[%s5 + $0x30] sm:$0xff]
  %v404 = vld [vmem:[%s5 + $0x38] sm:$0xff]
  %v405 = vld [vmem:[%s5 + $0x40] sm:$0xff]
  %v406 = vld [vmem:[%s5 + $0x48] sm:$0xff]
  %v407 = vld [vmem:[%s5 + $0x50] sm:$0xff]
  %v408 = vld [vmem:[%s5 + $0x58] sm:$0xff]
  %v409 = vld [vmem:[%s5 + $0x60] sm:$0xff]
  %v410 = vld [vmem:[%s5 + $0x68] sm:$0xff]
  %v411 = vld [vmem:[%s5 + $0x70] sm:$0xff]
  %v412 = vld [vmem:[%s5 + $0x78] sm:$0xff]
  %v413 = vld [vmem:[%s6] sm:$0x1]
  %v415 = vperm.slane %v413, 0
  %417 = vmatpush.msra.mxu0 %v412
  %418 = vmatpush.msra.mxu0 %v411
  %419 = vmatpush.msra.mxu0 %v410
  %420 = vmatpush.msra.mxu0 %v409
  %421 = vmatpush.msra.mxu0 %v408
  %422 = vmatpush.msra.mxu0 %v407
  %423 = vmatpush.msra.mxu0 %v406
  %424 = vmatpush.msra.mxu0 %v405
  %425 = vmatpush.msra.mxu0 %v404
  %426 = vmatpush.msra.mxu0 %v403
  %427 = vmatpush.msra.mxu0 %v402
  %428 = vmatpush.msra.mxu0 %v401
  %429 = vmatpush.msra.mxu0 %v400
  %430 = vmatpush.msra.mxu0 %v399
  %431 = vmatpush.msra.mxu0 %v398
  %432 = vmatpush.msra.mxu0 %v397
  %433 = vmatmul.f32.gmra.mxu0 %v372
  %v434 = vpop.f32.mrf.mxu0
  %v435 = vadd.f32 %v415, %v434
  %436 = vmatmul.f32.gmra.mxu0 %v373
  %v437 = vpop.f32.mrf.mxu0
  %v438 = vadd.f32 %v415, %v437
  %439 = vmatmul.f32.gmra.mxu0 %v374
  %v440 = vpop.f32.mrf.mxu0
  %v441 = vadd.f32 %v415, %v440
  %442 = vmatmul.f32.gmra.mxu0 %v375
  %v443 = vpop.f32.mrf.mxu0
  %v444 = vadd.f32 %v415, %v443
  %445 = vmatmul.f32.gmra.mxu0 %v376
  %v446 = vpop.f32.mrf.mxu0
  %v447 = vadd.f32 %v415, %v446
  %448 = vmatmul.f32.gmra.mxu0 %v377
  %v449 = vpop.f32.mrf.mxu0
  %v450 = vadd.f32 %v415, %v449
  %451 = vmatmul.f32.gmra.mxu0 %v378
  %v452 = vpop.f32.mrf.mxu0
  %v453 = vadd.f32 %v415, %v452
  %454 = vmatmul.f32.gmra.mxu0 %v379
  %v455 = vpop.f32.mrf.mxu0
  %v456 = vadd.f32 %v415, %v455
  %457 = vmatmul.f32.gmra.mxu0 %v380
  %v458 = vpop.f32.mrf.mxu0
  %v459 = vadd.f32 %v415, %v458
  %460 = vmatmul.f32.gmra.mxu0 %v381
  %v461 = vpop.f32.mrf.mxu0
  %v462 = vadd.f32 %v415, %v461
  %463 = vmatmul.f32.gmra.mxu0 %v382
  %v464 = vpop.f32.mrf.mxu0
  %v465 = vadd.f32 %v415, %v464
  %466 = vmatmul.f32.gmra.mxu0 %v383
  %v467 = vpop.f32.mrf.mxu0
  %v468 = vadd.f32 %v415, %v467
  %469 = vmatmul.f32.gmra.mxu0 %v384
  %v470 = vpop.f32.mrf.mxu0
  %v471 = vadd.f32 %v415, %v470
  %472 = vmatmul.f32.gmra.mxu0 %v385
  %v473 = vpop.f32.mrf.mxu0
  %v474 = vadd.f32 %v415, %v473
  %475 = vmatmul.f32.gmra.mxu0 %v386
  %v476 = vpop.f32.mrf.mxu0
  %v477 = vadd.f32 %v415, %v476
  %478 = vmatmul.f32.gmra.mxu0 %v387
  %v479 = vpop.f32.mrf.mxu0
  %v480 = vadd.f32 %v415, %v479
  %481 = vmatmul.f32.gmra.mxu0 %v388
  %v482 = vpop.f32.mrf.mxu0
  %v483 = vadd.f32 %v415, %v482
  %484 = vmatmul.f32.gmra.mxu0 %v389
  %v485 = vpop.f32.mrf.mxu0
  %v486 = vadd.f32 %v415, %v485
  %487 = vmatmul.f32.gmra.mxu0 %v390
  %v488 = vpop.f32.mrf.mxu0
  %v489 = vadd.f32 %v415, %v488
  %490 = vmatmul.f32.gmra.mxu0 %v391
  %v491 = vpop.f32.mrf.mxu0
  %v492 = vadd.f32 %v415, %v491
  %493 = vmatmul.f32.gmra.mxu0 %v392
  %v494 = vpop.f32.mrf.mxu0
  %v495 = vadd.f32 %v415, %v494
  %496 = vmatmul.f32.gmra.mxu0 %v393
  %v497 = vpop.f32.mrf.mxu0
  %v498 = vadd.f32 %v415, %v497
  %499 = vmatmul.f32.gmra.mxu0 %v394
  %v500 = vpop.f32.mrf.mxu0
  %v501 = vadd.f32 %v415, %v500
  %502 = vmatmul.f32.gmra.mxu0 %v395
  %v503 = vpop.f32.mrf.mxu0
  %v504 = vadd.f32 %v415, %v503
  %505 = vmatmul.f32.gmra.mxu0 %v396
  %v506 = vpop.f32.mrf.mxu0
  %v507 = vadd.f32 %v415, %v506
  %508 = vdwg.mxu0
  %v509 = vtanh.pop %v435
  %v510 = vtanh.pop %v438
  %v511 = vtanh.pop %v441
  %v512 = vtanh.pop %v444
  %v513 = vtanh.pop %v447
  %v514 = vtanh.pop %v450
  %v515 = vtanh.pop %v453
  %v516 = vtanh.pop %v456
  %v517 = vtanh.pop %v459
  %v518 = vtanh.pop %v462
  %v519 = vtanh.pop %v465
  %v520 = vtanh.pop %v468
  %v521 = vtanh.pop %v471
  %v522 = vtanh.pop %v474
  %v523 = vtanh.pop %v477
  %v524 = vtanh.pop %v480
  %v525 = vtanh.pop %v483
  %v526 = vtanh.pop %v486
  %v527 = vtanh.pop %v489
  %v528 = vtanh.pop %v492
  %v529 = vtanh.pop %v495
  %v530 = vtanh.pop %v498
  %v531 = vtanh.pop %v501
  %v532 = vtanh.pop %v504
  %v533 = vtanh.pop %v507
  %v534 = vld [vmem:[%s8] sm:$0x1]
  %v536 = vperm.slane %v534, 0
  %v538 = vmul.f32 %v509, %v536
  %v539 = vmul.f32 %v510, %v536
  %v540 = vmul.f32 %v511, %v536
  %v541 = vmul.f32 %v512, %v536
  %v542 = vmul.f32 %v513, %v536
  %v543 = vmul.f32 %v514, %v536
  %v544 = vmul.f32 %v515, %v536
  %v545 = vmul.f32 %v516, %v536
  %v546 = vmul.f32 %v517, %v536
  %v547 = vmul.f32 %v518, %v536
  %v548 = vmul.f32 %v519, %v536
  %v549 = vmul.f32 %v520, %v536
  %v550 = vmul.f32 %v521, %v536
  %v551 = vmul.f32 %v522, %v536
  %v552 = vmul.f32 %v523, %v536
  %v553 = vmul.f32 %v524, %v536
  %v554 = vmul.f32 %v525, %v536
  %v555 = vmul.f32 %v526, %v536
  %v556 = vmul.f32 %v527, %v536
  %v557 = vmul.f32 %v528, %v536
  %v558 = vmul.f32 %v529, %v536
  %v559 = vmul.f32 %v530, %v536
  %v560 = vmul.f32 %v531, %v536
  %v561 = vmul.f32 %v532, %v536
  %v562 = vmul.f32 %v533, %v536
  %v563 = vld [vmem:[%s7] sm:$0x1]
  %v565 = vperm.slane %v563, 0
  %v567 = vadd.f32 %v538, %v565
  %v568 = vadd.f32 %v539, %v565
  %v569 = vadd.f32 %v540, %v565
  %v570 = vadd.f32 %v541, %v565
  %v571 = vadd.f32 %v542, %v565
  %v572 = vadd.f32 %v543, %v565
  %v573 = vadd.f32 %v544, %v565
  %v574 = vadd.f32 %v545, %v565
  %v575 = vadd.f32 %v546, %v565
  %v576 = vadd.f32 %v547, %v565
  %v577 = vadd.f32 %v548, %v565
  %v578 = vadd.f32 %v549, %v565
  %v579 = vadd.f32 %v550, %v565
  %v580 = vadd.f32 %v551, %v565
  %v581 = vadd.f32 %v552, %v565
  %v582 = vadd.f32 %v553, %v565
  %v583 = vadd.f32 %v554, %v565
  %v584 = vadd.f32 %v555, %v565
  %v585 = vadd.f32 %v556, %v565
  %v586 = vadd.f32 %v557, %v565
  %v587 = vadd.f32 %v558, %v565
  %v588 = vadd.f32 %v559, %v565
  %v589 = vadd.f32 %v560, %v565
  %v590 = vadd.f32 %v561, %v565
  %v591 = vadd.f32 %v562, %v565
  %vm592 = vcmask 23552
  %593 = vst.msk [vmem:[%s9] sm:$0xff] %vm592, %v567
  %594 = vst.msk [vmem:[%s9 + $0x8] sm:$0xff] %vm592, %v568
  %595 = vst.msk [vmem:[%s9 + $0x10] sm:$0xff] %vm592, %v569
  %596 = vst.msk [vmem:[%s9 + $0x18] sm:$0xff] %vm592, %v570
  %597 = vst.msk [vmem:[%s9 + $0x20] sm:$0xff] %vm592, %v571
  %598 = vst.msk [vmem:[%s9 + $0x28] sm:$0xff] %vm592, %v572
  %599 = vst.msk [vmem:[%s9 + $0x30] sm:$0xff] %vm592, %v573
  %600 = vst.msk [vmem:[%s9 + $0x38] sm:$0xff] %vm592, %v574
  %601 = vst.msk [vmem:[%s9 + $0x40] sm:$0xff] %vm592, %v575
  %602 = vst.msk [vmem:[%s9 + $0x48] sm:$0xff] %vm592, %v576
  %603 = vst.msk [vmem:[%s9 + $0x50] sm:$0xff] %vm592, %v577
  %604 = vst.msk [vmem:[%s9 + $0x58] sm:$0xff] %vm592, %v578
  %605 = vst.msk [vmem:[%s9 + $0x60] sm:$0xff] %vm592, %v579
  %606 = vst.msk [vmem:[%s9 + $0x68] sm:$0xff] %vm592, %v580
  %607 = vst.msk [vmem:[%s9 + $0x70] sm:$0xff] %vm592, %v581
  %608 = vst.msk [vmem:[%s9 + $0x78] sm:$0xff] %vm592, %v582
  %609 = vst.msk [vmem:[%s9 + $0x80] sm:$0xff] %vm592, %v583
  %610 = vst.msk [vmem:[%s9 + $0x88] sm:$0xff] %vm592, %v584
  %611 = vst.msk [vmem:[%s9 + $0x90] sm:$0xff] %vm592, %v585
  %612 = vst.msk [vmem:[%s9 + $0x98] sm:$0xff] %vm592, %v586
  %613 = vst.msk [vmem:[%s9 + $0xa0] sm:$0xff] %vm592, %v587
  %614 = vst.msk [vmem:[%s9 + $0xa8] sm:$0xff] %vm592, %v588
  %615 = vst.msk [vmem:[%s9 + $0xb0] sm:$0xff] %vm592, %v589
  %616 = vst.msk [vmem:[%s9 + $0xb8] sm:$0xff] %vm592, %v590
  %617 = vst.msk [vmem:[%s9 + $0xc0] sm:$0xff] %vm592, %v591
  // Predicated region
  $region38: #{resdyn_mlp_forward.1} parent=0 // pred_check
    _
  $region39: #{resdyn_mlp_forward.1} parent=0 // pred_check_branch
    %619 = sbr.rel (0) target = $region41
  $region40: #{resdyn_mlp_forward.1} parent=0 // pred_region
    _
  $region41: #{resdyn_mlp_forward.1} parent=0 // pred_fallthru
    _
  // Predicated region
  $region42: #{resdyn_mlp_forward.1} parent=0 // pred_check
    _
  $region43: #{resdyn_mlp_forward.1} parent=0 // pred_check_branch
    %621 = sbr.rel (0) target = $region45
  $region44: #{resdyn_mlp_forward.1} parent=0 // pred_region
    _
  $region45: #{resdyn_mlp_forward.1} parent=0 // pred_fallthru
    _

</llo_original>
